<compile_context>
chip_gen: v5e
topology: v5e:2x2
jax: 0.10.0
libtpu: 0.0.40
codegen_flags: <defaults>
</compile_context>

<pallas_src>
import functools

import numpy as np
import jax
import jax.numpy as jnp
from jax.experimental import pallas as pl
from jax.experimental.pallas import tpu as pltpu

LANE = 128
NSLICES = 2          # leading "parallel" grid axis (v7x megacore); harmless on 1-TC chips
MAX_TILE_R = 1024    # 1024 x 128 f32 = 512 KiB per input block


def _fold_ref_to_8(ref, rows):
    """Tree-fold a (rows,128) accumulator ref (rows = 8*2^n) down to (8,128)."""
    if rows == 8:
        return ref[...]
    half = rows // 2
    x = ref[pl.ds(0, half), :] + ref[pl.ds(half, half), :]
    r = half
    while r > 8:
        r //= 2
        x = x[:r] + x[r:]
    return x


def _hdr_ff_kernel(*refs, steps, tile_r, total_valid, eps, has_weights):
    if has_weights:
        (g2_ref, inp_ref, tgt_ref, w_ref,
         loss_out_ref, reg_out_ref, loss_acc, reg_acc) = refs
    else:
        (g2_ref, inp_ref, tgt_ref,
         loss_out_ref, reg_out_ref, loss_acc, reg_acc) = refs
        w_ref = None

    i = pl.program_id(0)   # "parallel" slice (megacore)
    k = pl.program_id(1)   # streaming / reduction axis

    @pl.when(k == 0)
    def _():
        loss_acc[...] = jnp.zeros_like(loss_acc)
        reg_acc[...] = jnp.zeros_like(reg_acc)

    inp = inp_ref[...]
    tgt = tgt_ref[...]
    g2 = g2_ref[...]                      # factor*(1 - filter)^2, on both (re,im) lanes

    diff = inp - tgt
    dsq = diff * diff
    isq = inp * inp

    # Pair-sum adjacent (re, im) lanes of each complex element.  Rolling by 127
    # (== -1 mod 128) pairs lane j with lane j+1 or j-1 depending on the
    # hardware rotate convention; whichever it is, the correct |.|^2 lands on
    # exactly one lane of every (2m, 2m+1) pair, and THAT lane's mask is
    # derived from the same roll applied to a lane iota, so the kernel is
    # correct for either convention.
    err2 = dsq + pltpu.roll(dsq, 127, axis=1)   # |input - target|^2 (at valid lanes)
    in2 = isq + pltpu.roll(isq, 127, axis=1)    # |input|^2          (at valid lanes)

    lane_i = jax.lax.broadcasted_iota(jnp.int32, (tile_r, LANE), 1)
    lane_f = lane_i.astype(jnp.float32)
    partner = pltpu.roll(lane_f, 127, axis=1)
    is_even = (lane_i & 1) == 0
    lane_xor1 = jnp.where(is_even, lane_f + 1.0, lane_f - 1.0)
    pair_ok = partner == lane_xor1

    # Mask off the zero-padded tail of the flattened stream.
    row_i = jax.lax.broadcasted_iota(jnp.int32, (tile_r, LANE), 0)
    row0 = (i * steps + k) * tile_r
    pos = (row_i + row0) * LANE + lane_i
    valid = jnp.logical_and(pair_ok, pos < total_valid)

    # EUP work per element: sqrt, reciprocal, log  (3 ops).
    in_abs = jnp.sqrt(in2)
    inv_den = 1.0 / (in_abs + eps)              # shared by loss & reg terms
    inv2 = inv_den * inv_den

    # log(|err|/(|in|+eps))^2 == (0.5*log(|err|^2 * inv^2))^2 ; masked lanes -> log(1)=0
    r2 = jnp.where(valid, err2 * inv2, 1.0)
    lr = 0.5 * jnp.log(r2)
    loss_e = lr * lr
    if has_weights:
        loss_e = loss_e * w_ref[...]

    # |input - input*filter|^2 = (1-filter)^2 * |input|^2  (factor folded into g2)
    reg_e = jnp.where(valid, g2 * (in2 * inv2), 0.0)

    loss_acc[...] += loss_e
    reg_acc[...] += reg_e

    @pl.when(k == pl.num_programs(1) - 1)
    def _():
        loss_out_ref[...] = _fold_ref_to_8(loss_acc, tile_r)
        reg_out_ref[...] = _fold_ref_to_8(reg_acc, tile_r)


def hdr_loss_ff(inp, target, kcoords, weights=None, *, sigma, eps, factor,
                reduce=True, max_tile_r=MAX_TILE_R):
    """Pallas forward of HDRLoss_FF.  Returns (loss.mean()+reg.mean(), reg.mean())."""
    if not reduce:
        # TODO(synk): reduce=False (per-element loss/reg tensors) not implemented.
        raise NotImplementedError("reduce=False path not implemented")
    assert inp.shape == target.shape and inp.shape[-1] == 2

    inp_f = jnp.asarray(inp, jnp.float32)
    tgt_f = jnp.asarray(target, jnp.float32)
    kc = jnp.asarray(kcoords, jnp.float32)

    cshape = inp_f.shape[:-1]                 # complex-element shape
    num_elems = int(np.prod(cshape))          # E
    total_valid = 2 * num_elems               # floats in the interleaved stream

    # factor * (1 - filter_value)^2 per complex element, duplicated onto both
    # (re, im) lanes so it aligns with the interleaved input layout.
    dist2 = kc[..., 1] ** 2 + kc[..., 2] ** 2
    filt = jnp.exp(-dist2 / (2.0 * sigma * sigma))
    g2 = jnp.broadcast_to((float(factor) * (1.0 - filt) ** 2)[..., None],
                          cshape).reshape(-1)
    slabs = [jnp.repeat(g2, 2), inp_f.reshape(-1), tgt_f.reshape(-1)]

    has_weights = weights is not None
    if has_weights:
        w = jnp.broadcast_to(jnp.asarray(weights, jnp.float32)[..., None],
                             cshape).reshape(-1)
        slabs.append(jnp.repeat(w, 2))

    # Tile sizing: big (up to 512 KiB/block), power-of-two rows for the fold.
    max_tile_r = max(8, int(pl.next_power_of_2(int(max_tile_r))))
    rows_needed = pl.cdiv(total_valid, LANE)
    tile_r = int(max(8, min(max_tile_r,
                            pl.next_power_of_2(pl.cdiv(rows_needed, NSLICES)))))
    steps = int(pl.cdiv(rows_needed, NSLICES * tile_r))
    padded_rows = NSLICES * steps * tile_r
    assert padded_rows * LANE < 2 ** 31

    def to_slab(x):
        x = jnp.pad(x, (0, padded_rows * LANE - x.shape[0]))
        return x.reshape(padded_rows, LANE)

    slabs = [to_slab(x) for x in slabs]

    data_spec = pl.BlockSpec((tile_r, LANE), lambda i, k: (i * steps + k, 0))
    out_spec = pl.BlockSpec((8, LANE), lambda i, k: (i, 0))

    kernel = functools.partial(
        _hdr_ff_kernel, steps=steps, tile_r=tile_r, total_valid=total_valid,
        eps=float(eps), has_weights=has_weights)

    loss_part, reg_part = pl.pallas_call(
        kernel,
        out_shape=(jax.ShapeDtypeStruct((NSLICES * 8, LANE), jnp.float32),
                   jax.ShapeDtypeStruct((NSLICES * 8, LANE), jnp.float32)),
        grid_spec=pltpu.PrefetchScalarGridSpec(
            num_scalar_prefetch=0,
            grid=(NSLICES, steps),
            in_specs=[data_spec] * len(slabs),
            out_specs=(out_spec, out_spec),
            scratch_shapes=[pltpu.VMEM((tile_r, LANE), jnp.float32)] * 2,
        ),
        compiler_params=pltpu.CompilerParams(
            dimension_semantics=("parallel", "arbitrary")),
    )(*slabs)

    loss_mean = jnp.sum(loss_part) / num_elems
    reg_mean = jnp.sum(reg_part) / num_elems
    return loss_mean + reg_mean, reg_mean


class HDRLossFF:
    """JAX/Pallas port of the PyTorch HDRLoss_FF module (forward only)."""

    def __init__(self, config):
        self.sigma = float(config['hdr_ff_sigma'])
        self.eps = float(config['hdr_eps'])
        self.factor = float(config['hdr_ff_factor'])

    def __call__(self, inp, target, kcoords, weights=None, reduce=True, **kw):
        return hdr_loss_ff(inp, target, kcoords, weights,
                           sigma=self.sigma, eps=self.eps, factor=self.factor,
                           reduce=reduce, **kw)


def hdr_loss_ff_reference(inp, target, kcoords, weights=None, *, sigma, eps, factor):
    """Pure-JAX reference mirroring the PyTorch module."""
    inp_c = jax.lax.complex(inp[..., 0], inp[..., 1])
    tgt_c = jax.lax.complex(target[..., 0], target[..., 1])
    dist2 = kcoords[..., 1] ** 2 + kcoords[..., 2] ** 2
    filt = jnp.exp(-dist2 / (2.0 * sigma * sigma))[..., None]
    err = inp_c - tgt_c
    loss = jnp.log(jnp.abs(err) / (jnp.abs(inp_c) + eps)) ** 2
    if weights is not None:
        loss = loss * weights[..., None]
    reg = factor * (jnp.abs(inp_c - inp_c * filt) / (jnp.abs(inp_c) + eps)) ** 2
    return jnp.mean(loss) + jnp.mean(reg), jnp.mean(reg)


if __name__ == "__main__":
    key = jax.random.PRNGKey(0)
    k1, k2, k3, k4, k5, k6, k7 = jax.random.split(key, 7)

    config = {'hdr_ff_sigma': 1.0, 'hdr_eps': 1e-2, 'hdr_ff_factor': 0.5}
    loss_fn = HDRLossFF(config)

    # k-space samples: input/target (B, N, 1, 2) float (re, im), kcoords (B, N, 3)
    B, N = 2, 2048
    inp = jax.random.normal(k1, (B, N, 1, 2), dtype=jnp.float32)
    target = jax.random.normal(k2, (B, N, 1, 2), dtype=jnp.float32)
    kcoords = jax.random.normal(k3, (B, N, 3), dtype=jnp.float32)
    weights = jax.random.uniform(k4, (B, N), dtype=jnp.float32)

    # 1) default tiling, no weights
    fast1 = jax.jit(lambda a, b, c: loss_fn(a, b, c))
    out1, reg1 = jax.block_until_ready(fast1(inp, target, kcoords))
    ref1, rref1 = hdr_loss_ff_reference(inp, target, kcoords,
                                        sigma=1.0, eps=1e-2, factor=0.5)
    assert np.allclose(np.asarray(out1), np.asarray(ref1), rtol=2e-4, atol=1e-5), (
        float(out1), float(ref1))
    assert np.allclose(np.asarray(reg1), np.asarray(rref1), rtol=2e-4, atol=1e-5), (
        float(reg1), float(rref1))

    # 2) forced small tile -> multi-step accumulation over both grid slices, with weights
    fast2 = jax.jit(lambda a, b, c, w: loss_fn(a, b, c, w, max_tile_r=8))
    out2, reg2 = jax.block_until_ready(fast2(inp, target, kcoords, weights))
    ref2, rref2 = hdr_loss_ff_reference(inp, target, kcoords, weights,
                                        sigma=1.0, eps=1e-2, factor=0.5)
    assert np.allclose(np.asarray(out2), np.asarray(ref2), rtol=2e-4, atol=1e-5), (
        float(out2), float(ref2))
    assert np.allclose(np.asarray(reg2), np.asarray(rref2), rtol=2e-4, atol=1e-5), (
        float(reg2), float(rref2))

    # 3) odd element count -> exercises the padded-tail mask
    B3, N3 = 1, 1000
    inp3 = jax.random.normal(k5, (B3, N3, 1, 2), dtype=jnp.float32)
    tgt3 = jax.random.normal(k6, (B3, N3, 1, 2), dtype=jnp.float32)
    kc3 = jax.random.normal(k7, (B3, N3, 3), dtype=jnp.float32)
    fast3 = jax.jit(lambda a, b, c: loss_fn(a, b, c))
    out3, reg3 = jax.block_until_ready(fast3(inp3, tgt3, kc3))
    ref3, rref3 = hdr_loss_ff_reference(inp3, tgt3, kc3,
                                        sigma=1.0, eps=1e-2, factor=0.5)
    assert np.allclose(np.asarray(out3), np.asarray(ref3), rtol=2e-4, atol=1e-5), (
        float(out3), float(ref3))
    assert np.allclose(np.asarray(reg3), np.asarray(rref3), rtol=2e-4, atol=1e-5), (
        float(reg3), float(rref3))

    print("KERNEL_OK")
</pallas_src>

<mosaic_0001>
module attributes {stable_mosaic.version = 11 : i64} {
  func.func @_hdr_ff_kernel(%arg0: i32, %arg1: i32, %arg2: memref<32x128xf32, #tpu.memory_space<vmem>>, %arg3: memref<32x128xf32, #tpu.memory_space<vmem>>, %arg4: memref<32x128xf32, #tpu.memory_space<vmem>>, %arg5: memref<8x128xf32, #tpu.memory_space<vmem>>, %arg6: memref<8x128xf32, #tpu.memory_space<vmem>>, %arg7: memref<32x128xf32, #tpu.memory_space<vmem>>, %arg8: memref<32x128xf32, #tpu.memory_space<vmem>>) attributes {dimension_semantics = [#tpu.dimension_semantics<parallel>, #tpu.dimension_semantics<arbitrary>], iteration_bounds = array<i64: 2, 1>, scalar_prefetch = 0 : i64, scratch_operands = 2 : i64, tpu.core_type = #tpu.core_type<tc>, window_params = [{transform_indices = @transform_0, window_bounds = array<i64: 32, 128>}, {transform_indices = @transform_1, window_bounds = array<i64: 32, 128>}, {transform_indices = @transform_2, window_bounds = array<i64: 32, 128>}, {transform_indices = @transform_3, window_bounds = array<i64: 8, 128>}, {transform_indices = @transform_4, window_bounds = array<i64: 8, 128>}]} {
    %c0_i32 = arith.constant 0 : i32
    %0 = arith.cmpi eq, %arg1, %c0_i32 : i32
    %1 = arith.extui %0 : i1 to i32
    %c0_i32_0 = arith.constant 0 : i32
    %2 = arith.cmpi ne, %1, %c0_i32_0 : i32
    scf.if %2 {
      %cst_26 = arith.constant 0.000000e+00 : f32
      %64 = vector.broadcast %cst_26 : f32 to vector<32x128xf32>
      %c0_27 = arith.constant 0 : index
      %c0_28 = arith.constant 0 : index
      %65 = vector.load %arg7[%c0_27, %c0_28] : memref<32x128xf32, #tpu.memory_space<vmem>>, vector<32x128xf32>
      tpu.vector_store %arg7[%c0_27, %c0_28], %64 {strides = array<i32>} : memref<32x128xf32, #tpu.memory_space<vmem>>, vector<32x128xf32>,
      %cst_29 = arith.constant 0.000000e+00 : f32
      %66 = vector.broadcast %cst_29 : f32 to vector<32x128xf32>
      %c0_30 = arith.constant 0 : index
      %c0_31 = arith.constant 0 : index
      %67 = vector.load %arg8[%c0_30, %c0_31] : memref<32x128xf32, #tpu.memory_space<vmem>>, vector<32x128xf32>
      tpu.vector_store %arg8[%c0_30, %c0_31], %66 {strides = array<i32>} : memref<32x128xf32, #tpu.memory_space<vmem>>, vector<32x128xf32>,
    } else {
    }
    %c0 = arith.constant 0 : index
    %c0_1 = arith.constant 0 : index
    %3 = vector.load %arg3[%c0, %c0_1] : memref<32x128xf32, #tpu.memory_space<vmem>>, vector<32x128xf32>
    %c0_2 = arith.constant 0 : index
    %c0_3 = arith.constant 0 : index
    %4 = vector.load %arg4[%c0_2, %c0_3] : memref<32x128xf32, #tpu.memory_space<vmem>>, vector<32x128xf32>
    %c0_4 = arith.constant 0 : index
    %c0_5 = arith.constant 0 : index
    %5 = vector.load %arg2[%c0_4, %c0_5] : memref<32x128xf32, #tpu.memory_space<vmem>>, vector<32x128xf32>
    %6 = arith.subf %3, %4 : vector<32x128xf32>
    %7 = arith.mulf %6, %6 : vector<32x128xf32>
    %8 = arith.mulf %3, %3 : vector<32x128xf32>
    %c127_i32 = arith.constant 127 : i32
    %9 = tpu.dynamic_rotate %7 by %c127_i32 dim 1 : vector<32x128xf32>, i32 -> vector<32x128xf32>
    %10 = arith.addf %7, %9 : vector<32x128xf32>
    %c127_i32_6 = arith.constant 127 : i32
    %11 = tpu.dynamic_rotate %8 by %c127_i32_6 dim 1 : vector<32x128xf32>, i32 -> vector<32x128xf32>
    %12 = arith.addf %8, %11 : vector<32x128xf32>
    %13 = tpu.iota {dimensions = array<i32: 1>} : vector<32x128xi32>
    %14 = arith.sitofp %13 : vector<32x128xi32> to vector<32x128xf32>
    %c127_i32_7 = arith.constant 127 : i32
    %15 = tpu.dynamic_rotate %14 by %c127_i32_7 dim 1 : vector<32x128xf32>, i32 -> vector<32x128xf32>
    %c1_i32 = arith.constant 1 : i32
    %16 = vector.broadcast %c1_i32 : i32 to vector<32x128xi32>
    %17 = arith.andi %13, %16 : vector<32x128xi32>
    %c0_i32_8 = arith.constant 0 : i32
    %18 = vector.broadcast %c0_i32_8 : i32 to vector<32x128xi32>
    %19 = arith.cmpi eq, %17, %18 : vector<32x128xi32>
    %cst = arith.constant 1.000000e+00 : f32
    %20 = vector.broadcast %cst : f32 to vector<32x128xf32>
    %21 = arith.addf %14, %20 : vector<32x128xf32>
    %cst_9 = arith.constant 1.000000e+00 : f32
    %22 = vector.broadcast %cst_9 : f32 to vector<32x128xf32>
    %23 = arith.subf %14, %22 : vector<32x128xf32>
    %24 = arith.select %19, %21, %23 : vector<32x128xi1>, vector<32x128xf32>
    %25 = arith.cmpf oeq, %15, %24 : vector<32x128xf32>
    %26 = tpu.iota {dimensions = array<i32: 0>} : vector<32x128xi32>
    %c1_i32_10 = arith.constant 1 : i32
    %27 = arith.muli %arg0, %c1_i32_10 : i32
    %28 = arith.addi %27, %arg1 : i32
    %c32_i32 = arith.constant 32 : i32
    %29 = arith.muli %28, %c32_i32 : i32
    %30 = vector.broadcast %29 : i32 to vector<32x128xi32>
    %31 = arith.addi %26, %30 : vector<32x128xi32>
    %c128_i32 = arith.constant 128 : i32
    %32 = vector.broadcast %c128_i32 : i32 to vector<32x128xi32>
    %33 = arith.muli %31, %32 : vector<32x128xi32>
    %34 = arith.addi %33, %13 : vector<32x128xi32>
    %c8192_i32 = arith.constant 8192 : i32
    %35 = vector.broadcast %c8192_i32 : i32 to vector<32x128xi32>
    %36 = arith.cmpi slt, %34, %35 : vector<32x128xi32>
    %37 = arith.andi %25, %36 : vector<32x128xi1>
    %38 = math.sqrt %12 : vector<32x128xf32>
    %cst_11 = arith.constant 0.00999999977 : f32
    %39 = vector.broadcast %cst_11 : f32 to vector<32x128xf32>
    %40 = arith.addf %38, %39 : vector<32x128xf32>
    %cst_12 = arith.constant 1.000000e+00 : f32
    %41 = vector.broadcast %cst_12 : f32 to vector<32x128xf32>
    %42 = arith.divf %41, %40 : vector<32x128xf32>
    %43 = arith.mulf %42, %42 : vector<32x128xf32>
    %44 = arith.mulf %10, %43 : vector<32x128xf32>
    %cst_13 = arith.constant 1.000000e+00 : f32
    %45 = vector.broadcast %cst_13 : f32 to vector<32x128xf32>
    %46 = arith.select %37, %44, %45 : vector<32x128xi1>, vector<32x128xf32>
    %47 = math.log %46 : vector<32x128xf32>
    %cst_14 = arith.constant 5.000000e-01 : f32
    %48 = vector.broadcast %cst_14 : f32 to vector<32x128xf32>
    %49 = arith.mulf %48, %47 : vector<32x128xf32>
    %50 = arith.mulf %49, %49 : vector<32x128xf32>
    %51 = arith.mulf %12, %43 : vector<32x128xf32>
    %52 = arith.mulf %5, %51 : vector<32x128xf32>
    %cst_15 = arith.constant 0.000000e+00 : f32
    %53 = vector.broadcast %cst_15 : f32 to vector<32x128xf32>
    %54 = arith.select %37, %52, %53 : vector<32x128xi1>, vector<32x128xf32>
    %c0_16 = arith.constant 0 : index
    %c0_17 = arith.constant 0 : index
    %55 = vector.load %arg7[%c0_16, %c0_17] : memref<32x128xf32, #tpu.memory_space<vmem>>, vector<32x128xf32>
    %56 = arith.addf %55, %50 : vector<32x128xf32>
    %c0_18 = arith.constant 0 : index
    %c0_19 = arith.constant 0 : index
    %57 = vector.load %arg7[%c0_18, %c0_19] : memref<32x128xf32, #tpu.memory_space<vmem>>, vector<32x128xf32>
    tpu.vector_store %arg7[%c0_18, %c0_19], %56 {strides = array<i32>} : memref<32x128xf32, #tpu.memory_space<vmem>>, vector<32x128xf32>,
    %c0_20 = arith.constant 0 : index
    %c0_21 = arith.constant 0 : index
    %58 = vector.load %arg8[%c0_20, %c0_21] : memref<32x128xf32, #tpu.memory_space<vmem>>, vector<32x128xf32>
    %59 = arith.addf %58, %54 : vector<32x128xf32>
    %c0_22 = arith.constant 0 : index
    %c0_23 = arith.constant 0 : index
    %60 = vector.load %arg8[%c0_22, %c0_23] : memref<32x128xf32, #tpu.memory_space<vmem>>, vector<32x128xf32>
    tpu.vector_store %arg8[%c0_22, %c0_23], %59 {strides = array<i32>} : memref<32x128xf32, #tpu.memory_space<vmem>>, vector<32x128xf32>,
    %c0_i32_24 = arith.constant 0 : i32
    %61 = arith.cmpi eq, %arg1, %c0_i32_24 : i32
    %62 = arith.extui %61 : i1 to i32
    %c0_i32_25 = arith.constant 0 : i32
    %63 = arith.cmpi ne, %62, %c0_i32_25 : i32
    scf.if %63 {
      %c0_26 = arith.constant 0 : index
      %c0_27 = arith.constant 0 : index
      %64 = vector.load %arg7[%c0_26, %c0_27] : memref<32x128xf32, #tpu.memory_space<vmem>>, vector<16x128xf32>
      %c16 = arith.constant 16 : index
      %c0_28 = arith.constant 0 : index
      %65 = vector.load %arg7[%c16, %c0_28] : memref<32x128xf32, #tpu.memory_space<vmem>>, vector<16x128xf32>
      %66 = arith.addf %64, %65 : vector<16x128xf32>
      %67 = vector.extract_strided_slice %66 {offsets = [0, 0], sizes = [8, 128], strides = [1, 1]} : vector<16x128xf32> to vector<8x128xf32>
      %68 = vector.extract_strided_slice %66 {offsets = [8, 0], sizes = [8, 128], strides = [1, 1]} : vector<16x128xf32> to vector<8x128xf32>
      %69 = arith.addf %67, %68 : vector<8x128xf32>
      %c0_29 = arith.constant 0 : index
      %c0_30 = arith.constant 0 : index
      %70 = vector.load %arg5[%c0_29, %c0_30] : memref<8x128xf32, #tpu.memory_space<vmem>>, vector<8x128xf32>
      tpu.vector_store %arg5[%c0_29, %c0_30], %69 {strides = array<i32>} : memref<8x128xf32, #tpu.memory_space<vmem>>, vector<8x128xf32>,
      %c0_31 = arith.constant 0 : index
      %c0_32 = arith.constant 0 : index
      %71 = vector.load %arg8[%c0_31, %c0_32] : memref<32x128xf32, #tpu.memory_space<vmem>>, vector<16x128xf32>
      %c16_33 = arith.constant 16 : index
      %c0_34 = arith.constant 0 : index
      %72 = vector.load %arg8[%c16_33, %c0_34] : memref<32x128xf32, #tpu.memory_space<vmem>>, vector<16x128xf32>
      %73 = arith.addf %71, %72 : vector<16x128xf32>
      %74 = vector.extract_strided_slice %73 {offsets = [0, 0], sizes = [8, 128], strides = [1, 1]} : vector<16x128xf32> to vector<8x128xf32>
      %75 = vector.extract_strided_slice %73 {offsets = [8, 0], sizes = [8, 128], strides = [1, 1]} : vector<16x128xf32> to vector<8x128xf32>
      %76 = arith.addf %74, %75 : vector<8x128xf32>
      %c0_35 = arith.constant 0 : index
      %c0_36 = arith.constant 0 : index
      %77 = vector.load %arg6[%c0_35, %c0_36] : memref<8x128xf32, #tpu.memory_space<vmem>>, vector<8x128xf32>
      tpu.vector_store %arg6[%c0_35, %c0_36], %76 {strides = array<i32>} : memref<8x128xf32, #tpu.memory_space<vmem>>, vector<8x128xf32>,
    } else {
    }
    return
  }
  func.func @transform_0(%arg0: i32, %arg1: i32) -> (i32, i32) {
    %c1_i32 = arith.constant 1 : i32
    %0 = arith.muli %arg0, %c1_i32 : i32
    %1 = arith.addi %0, %arg1 : i32
    %c0_i32 = arith.constant 0 : i32
    %c0_i32_0 = arith.constant 0 : i32
    return %1, %c0_i32 : i32, i32
  }
  func.func @transform_1(%arg0: i32, %arg1: i32) -> (i32, i32) {
    %c1_i32 = arith.constant 1 : i32
    %0 = arith.muli %arg0, %c1_i32 : i32
    %1 = arith.addi %0, %arg1 : i32
    %c0_i32 = arith.constant 0 : i32
    %c0_i32_0 = arith.constant 0 : i32
    return %1, %c0_i32 : i32, i32
  }
  func.func @transform_2(%arg0: i32, %arg1: i32) -> (i32, i32) {
    %c1_i32 = arith.constant 1 : i32
    %0 = arith.muli %arg0, %c1_i32 : i32
    %1 = arith.addi %0, %arg1 : i32
    %c0_i32 = arith.constant 0 : i32
    %c0_i32_0 = arith.constant 0 : i32
    return %1, %c0_i32 : i32, i32
  }
  func.func @transform_3(%arg0: i32, %arg1: i32) -> (i32, i32) {
    %c0_i32 = arith.constant 0 : i32
    %c0_i32_0 = arith.constant 0 : i32
    return %arg0, %c0_i32 : i32, i32
  }
  func.func @transform_4(%arg0: i32, %arg1: i32) -> (i32, i32) {
    %c0_i32 = arith.constant 0 : i32
    %c0_i32_0 = arith.constant 0 : i32
    return %arg0, %c0_i32 : i32, i32
  }
}

</mosaic_0001>

<llo_original>
// kernel: _lambda_.1
$region0: #{_lambda_.1}
  #allocation0 [shape = 'u32[]', space=smem, size = 0x4, offset = 0x4, fixed_abs, tag = 'smem constant byte address 0x4 - core index']
  #allocation1 [shape = 'u32[72,128]{1,0:T(1,128)}', space=vmem, size = 0x9000, scoped, tag = 'internal scratch']
  #allocation2 [shape = 'f32[32,128]{1,0:T(8,128)}', space=vmem, size = 0x4000, scoped, tag = 'scratch operand']
  #allocation3 [shape = 'f32[32,128]{1,0:T(8,128)}', space=vmem, size = 0x4000, scoped, tag = 'scratch operand']
  %s0 = inlined_call_operand.vmem [shape: f32[64,128], index: 0, kind: input, shape index: {}]
  %s1 = inlined_call_operand.vmem [shape: f32[64,128], index: 1, kind: input, shape index: {}]
  %s2 = inlined_call_operand.vmem [shape: f32[64,128], index: 2, kind: input, shape index: {}]
  %s3 = inlined_call_operand.vmem [shape: f32[16,128], index: 3, kind: output, shape index: {0}]
  %s4 = inlined_call_operand.vmem [shape: f32[16,128], index: 4, kind: output, shape index: {1}]
  %5 = xla_tuple %s3, %s4
  %s6 = sld [smem:[#allocation0]]
  $region61: #{_lambda_.1} parent=0
    _
  %s8 = ssub.s32 1, %s6
  %s9 = scalar_select 0, %s8, %s6
  loop: start=0, step=1, limit=4
  $region2: #{_lambda_.1} parent=0 // loop_pre_header
    _
  $region3: #{_lambda_.1} parent=0 // loop_header
    %s11 = sphi 0, %s15
    %p12 = scmp.ge.s32.totalorder %s11, 4
    %s18 = sphi 0, %s30
    %s19 = sphi 0, %s26
    %s20 = sphi 0, %s18
    %s21 = sphi 0, %s19
    %s22 = sphi 0, %s20
    %s23 = sphi 0, %s21
    %s35 = sphi 0, %s37
    %s38 = sphi 0, %s35
    %s39 = sphi 0, %s38
    %s55 = sphi 0, %s39
    %s63 = sphi 0, %s65
    %s66 = sphi 0, %s63
    %s67 = sphi 0, %s66
    %s83 = sphi 0, %s67
    %s91 = sphi 0, %s93
    %s94 = sphi 0, %s91
    %s95 = sphi 0, %s94
    %s111 = sphi 0, %s95
    %s117 = sphi 0, %s119
    %s120 = sphi 0, %s117
    %s121 = sphi 0, %s120
    %s137 = sphi 0, %s121
    %s143 = sphi 0, %s145
    %s146 = sphi 0, %s143
    %s147 = sphi 0, %s146
    %s163 = sphi 0, %s147
  $region4: #{_lambda_.1} parent=0 // loop_header_branch
    %14 = sbr.rel (%p12) target = $region8
  $region5: #{_lambda_.1} parent=0 // loop_body
    %s16 = ssub.s32 %s11, 1
    %s17 = ssub.s32 %s11, 2
    %s24 = sadd.s32 1, %s19
    %p25 = scmp.ge.s32.totalorder %s24, 1
    %s26 = scalar_select %p25, 0, %s24
    %s27 = sadd.s32 1, %s18
    %s28 = scalar_select %p25, %s27, %s18
    %p29 = scmp.ge.s32.totalorder %s28, 2
    %s30 = scalar_select %p29, 0, %s28
    %s31 = sadd.s32 %s18, %s19
    %s32 = sadd.s32 %s30, %s26
    %s33 = ssub.s32 %s31, %s32
    %p34 = scmp.eq.s32.totalorder %s33, 0
    %s36 = sadd.s32 %s35, 1
    %s37 = scalar_select %p34, %s35, %s36
    %p40 = pneg %p34
    %p41 = scmp.eq.s32.totalorder %s11, 1
    %p42 = por %p40, %p41
    %p43 = scmp.ne.s32.totalorder %s35, %s38
    %p44 = scmp.eq.s32.totalorder %s11, 0
    %p45 = por %p43, %p44
    %p46 = scmp.ne.s32.totalorder %s35, %s38
    %p47 = scmp.eq.s32.totalorder %s16, 1
    %p48 = por %p46, %p47
    %p49 = scmp.ne.s32.totalorder %s38, %s39
    %p50 = scmp.eq.s32.totalorder %s16, 0
    %p51 = por %p49, %p50
    %p52 = scmp.ne.s32.totalorder %s38, %s39
    %p53 = scmp.eq.s32.totalorder %s17, 1
    %p54 = por %p52, %p53
    %p56 = scmp.ne.s32.totalorder %s39, %s55
    %p57 = scmp.eq.s32.totalorder %s17, 0
    %p58 = por %p56, %p57
    %s59 = sadd.s32 %s18, %s19
    %s60 = sadd.s32 %s30, %s26
    %s61 = ssub.s32 %s59, %s60
    %p62 = scmp.eq.s32.totalorder %s61, 0
    %s64 = sadd.s32 %s63, 1
    %s65 = scalar_select %p62, %s63, %s64
    %p68 = pneg %p62
    %p69 = scmp.eq.s32.totalorder %s11, 1
    %p70 = por %p68, %p69
    %p71 = scmp.ne.s32.totalorder %s63, %s66
    %p72 = scmp.eq.s32.totalorder %s11, 0
    %p73 = por %p71, %p72
    %p74 = scmp.ne.s32.totalorder %s63, %s66
    %p75 = scmp.eq.s32.totalorder %s16, 1
    %p76 = por %p74, %p75
    %p77 = scmp.ne.s32.totalorder %s66, %s67
    %p78 = scmp.eq.s32.totalorder %s16, 0
    %p79 = por %p77, %p78
    %p80 = scmp.ne.s32.totalorder %s66, %s67
    %p81 = scmp.eq.s32.totalorder %s17, 1
    %p82 = por %p80, %p81
    %p84 = scmp.ne.s32.totalorder %s67, %s83
    %p85 = scmp.eq.s32.totalorder %s17, 0
    %p86 = por %p84, %p85
    %s87 = sadd.s32 %s18, %s19
    %s88 = sadd.s32 %s30, %s26
    %s89 = ssub.s32 %s87, %s88
    %p90 = scmp.eq.s32.totalorder %s89, 0
    %s92 = sadd.s32 %s91, 1
    %s93 = scalar_select %p90, %s91, %s92
    %p96 = pneg %p90
    %p97 = scmp.eq.s32.totalorder %s11, 1
    %p98 = por %p96, %p97
    %p99 = scmp.ne.s32.totalorder %s91, %s94
    %p100 = scmp.eq.s32.totalorder %s11, 0
    %p101 = por %p99, %p100
    %p102 = scmp.ne.s32.totalorder %s91, %s94
    %p103 = scmp.eq.s32.totalorder %s16, 1
    %p104 = por %p102, %p103
    %p105 = scmp.ne.s32.totalorder %s94, %s95
    %p106 = scmp.eq.s32.totalorder %s16, 0
    %p107 = por %p105, %p106
    %p108 = scmp.ne.s32.totalorder %s94, %s95
    %p109 = scmp.eq.s32.totalorder %s17, 1
    %p110 = por %p108, %p109
    %p112 = scmp.ne.s32.totalorder %s95, %s111
    %p113 = scmp.eq.s32.totalorder %s17, 0
    %p114 = por %p112, %p113
    %s115 = ssub.s32 %s18, %s30
    %p116 = scmp.eq.s32.totalorder %s115, 0
    %s118 = sadd.s32 %s117, 1
    %s119 = scalar_select %p116, %s117, %s118
    %p122 = pneg %p116
    %p123 = scmp.eq.s32.totalorder %s11, 1
    %p124 = por %p122, %p123
    %p125 = scmp.ne.s32.totalorder %s117, %s120
    %p126 = scmp.eq.s32.totalorder %s11, 0
    %p127 = por %p125, %p126
    %p128 = scmp.ne.s32.totalorder %s117, %s120
    %p129 = scmp.eq.s32.totalorder %s16, 1
    %p130 = por %p128, %p129
    %p131 = scmp.ne.s32.totalorder %s120, %s121
    %p132 = scmp.eq.s32.totalorder %s16, 0
    %p133 = por %p131, %p132
    %p134 = scmp.ne.s32.totalorder %s120, %s121
    %p135 = scmp.eq.s32.totalorder %s17, 1
    %p136 = por %p134, %p135
    %p138 = scmp.ne.s32.totalorder %s121, %s137
    %p139 = scmp.eq.s32.totalorder %s17, 0
    %p140 = por %p138, %p139
    %s141 = ssub.s32 %s18, %s30
    %p142 = scmp.eq.s32.totalorder %s141, 0
    %s144 = sadd.s32 %s143, 1
    %s145 = scalar_select %p142, %s143, %s144
    %p148 = pneg %p142
    %p149 = scmp.eq.s32.totalorder %s11, 1
    %p150 = por %p148, %p149
    %p151 = scmp.ne.s32.totalorder %s143, %s146
    %p152 = scmp.eq.s32.totalorder %s11, 0
    %p153 = por %p151, %p152
    %p154 = scmp.ne.s32.totalorder %s143, %s146
    %p155 = scmp.eq.s32.totalorder %s16, 1
    %p156 = por %p154, %p155
    %p157 = scmp.ne.s32.totalorder %s146, %s147
    %p158 = scmp.eq.s32.totalorder %s16, 0
    %p159 = por %p157, %p158
    %p160 = scmp.ne.s32.totalorder %s146, %s147
    %p161 = scmp.eq.s32.totalorder %s17, 1
    %p162 = por %p160, %p161
    %p164 = scmp.ne.s32.totalorder %s147, %s163
    %p165 = scmp.eq.s32.totalorder %s17, 0
    %p166 = por %p164, %p165
    %p167 = scmp.le.s32.totalorder 1, %s11
    %p168 = scmp.lt.s32.totalorder %s11, 3
    %p169 = pnand %p167, %p168
    %p170 = pneg %p169
    // Predicated region
    $region9: #{_lambda_.1} parent=5 // pred_check
      _
    $region10: #{_lambda_.1} parent=5 // pred_check_branch
      %172 = sbr.rel (%p169) target = $region12
    $region11: #{_lambda_.1} parent=5 // pred_region
      %s173 = ssub.s32 %s11, 1
    $region12: #{_lambda_.1} parent=5 // pred_fallthru
      _
    %p174 = scmp.lt.s32.totalorder %s11, 2
    // Predicated region
    $region13: #{_lambda_.1} parent=5 // pred_check
      %p175 = pneg %p174
    $region14: #{_lambda_.1} parent=5 // pred_check_branch
      %177 = sbr.rel (%p175) target = $region16
    $region15: #{_lambda_.1} parent=5 // pred_region
      // Predicated region
      $region17: #{_lambda_.1} parent=15 // pred_check
        %p178 = pneg %p45
      $region18: #{_lambda_.1} parent=15 // pred_check_branch
        %180 = sbr.rel (%p178) target = $region20
      $region19: #{_lambda_.1} parent=15 // pred_region
        %s181 = sadd.s32 %s18, %s19
        %s182 = smul.u32 4, %s181
        %p183 = scmp.lt.s32.totalorder %s182, 7
        %s184 = scalar_select %p183, %s182, 7
        %s185 = smul.addr %s184, 8
        %s186 = scalar_lea.vmem %s0, %s185
        %s187 = sadd.s32 %s18, %s19
        %s188 = smul.u32 4, %s187
      $region20: #{_lambda_.1} parent=15 // pred_fallthru
        _
      // Predicated region
      $region21: #{_lambda_.1} parent=15 // pred_check
        %p189 = pneg %p73
      $region22: #{_lambda_.1} parent=15 // pred_check_branch
        %191 = sbr.rel (%p189) target = $region24
      $region23: #{_lambda_.1} parent=15 // pred_region
        %s192 = sadd.s32 %s18, %s19
        %s193 = smul.u32 4, %s192
        %p194 = scmp.lt.s32.totalorder %s193, 7
        %s195 = scalar_select %p194, %s193, 7
        %s196 = smul.addr %s195, 8
        %s197 = scalar_lea.vmem %s1, %s196
        %s198 = sadd.s32 %s18, %s19
        %s199 = smul.u32 4, %s198
      $region24: #{_lambda_.1} parent=15 // pred_fallthru
        _
      // Predicated region
      $region25: #{_lambda_.1} parent=15 // pred_check
        %p200 = pneg %p101
      $region26: #{_lambda_.1} parent=15 // pred_check_branch
        %202 = sbr.rel (%p200) target = $region28
      $region27: #{_lambda_.1} parent=15 // pred_region
        %s203 = sadd.s32 %s18, %s19
        %s204 = smul.u32 4, %s203
        %p205 = scmp.lt.s32.totalorder %s204, 7
        %s206 = scalar_select %p205, %s204, 7
        %s207 = smul.addr %s206, 8
        %s208 = scalar_lea.vmem %s2, %s207
        %s209 = sadd.s32 %s18, %s19
        %s210 = smul.u32 4, %s209
      $region28: #{_lambda_.1} parent=15 // pred_fallthru
        _
    $region16: #{_lambda_.1} parent=5 // pred_fallthru
      _
    %p211 = scmp.le.s32.totalorder 1, %s11
    %p212 = scmp.lt.s32.totalorder %s11, 3
    %p213 = pnand %p211, %p212
    %p214 = pneg %p213
    // Predicated region
    $region29: #{_lambda_.1} parent=5 // pred_check
      _
    $region30: #{_lambda_.1} parent=5 // pred_check_branch
      %216 = sbr.rel (%p213) target = $region32
    $region31: #{_lambda_.1} parent=5 // pred_region
      %s217 = ssub.s32 %s11, 1
      %s218 = sadd.s32 %s20, %s21
      %s219 = smul.u32 4, %s218
      %p220 = scmp.lt.s32.totalorder %s219, 7
      %s221 = scalar_select %p220, %s219, 7
      %s222 = smul.addr %s221, 8
      %s223 = scalar_lea.vmem %s0, %s222
      %p224 = pneg %p51
      %p225 = pneg %p48
      %s226 = sadd.s32 %s20, %s21
      %s227 = smul.u32 4, %s226
      %p228 = scmp.lt.s32.totalorder %s227, 7
      %s229 = scalar_select %p228, %s227, 7
      %s230 = smul.addr %s229, 8
      %s231 = scalar_lea.vmem %s1, %s230
      %p232 = pneg %p79
      %p233 = pneg %p76
      %s234 = sadd.s32 %s20, %s21
      %s235 = smul.u32 4, %s234
      %p236 = scmp.lt.s32.totalorder %s235, 7
      %s237 = scalar_select %p236, %s235, 7
      %s238 = smul.addr %s237, 8
      %s239 = scalar_lea.vmem %s2, %s238
      %p240 = pneg %p107
      %p241 = pneg %p104
      %p242 = pneg %p133
      %p243 = pneg %p130
      %p244 = scmp.lt.s32.totalorder %s20, 1
      %s245 = scalar_select %p244, %s20, 1
      %s246 = smul.addr %s245, 8
      %s247 = scalar_lea.vmem %s3, %s246
      %p248 = pneg %p159
      %p249 = pneg %p156
      %p250 = scmp.lt.s32.totalorder %s20, 1
      %s251 = scalar_select %p250, %s20, 1
      %s252 = smul.addr %s251, 8
      %s253 = scalar_lea.vmem %s4, %s252
      %s254 = sadd.s32 %s20, %s21
      %s255 = smul.u32 4, %s254
      %p256 = scmp.lt.s32.totalorder %s255, 7
      %s257 = scalar_select %p256, %s255, 7
      %s258 = smul.addr %s257, 8
      %s259 = scalar_lea.vmem %s0, %s258
      %s260 = sadd.s32 %s20, %s21
      %s261 = smul.u32 4, %s260
      %s262 = sadd.s32 %s20, %s21
      %s263 = smul.u32 4, %s262
      %p264 = scmp.lt.s32.totalorder %s263, 7
      %s265 = scalar_select %p264, %s263, 7
      %s266 = smul.addr %s265, 8
      %s267 = scalar_lea.vmem %s1, %s266
      %s268 = sadd.s32 %s20, %s21
      %s269 = smul.u32 4, %s268
      %s270 = sadd.s32 %s20, %s21
      %s271 = smul.u32 4, %s270
      %p272 = scmp.lt.s32.totalorder %s271, 7
      %s273 = scalar_select %p272, %s271, 7
      %s274 = smul.addr %s273, 8
      %s275 = scalar_lea.vmem %s2, %s274
      %s276 = sadd.s32 %s20, %s21
      %s277 = smul.u32 4, %s276
      %p278 = scmp.lt.s32.totalorder %s20, 1
      %s279 = scalar_select %p278, %s20, 1
      %s280 = smul.addr %s279, 8
      %s281 = scalar_lea.vmem %s3, %s280
      %p282 = scmp.lt.s32.totalorder %s20, 1
      %s283 = scalar_select %p282, %s20, 1
      %s284 = smul.addr %s283, 8
      %s285 = scalar_lea.vmem %s4, %s284
      %p286 = scmp.eq.s32.totalorder %s21, 0
      // Predicated region
      $region33: #{_lambda_.1} parent=31 // pred_check
        %p287 = pneg %p286
      $region34: #{_lambda_.1} parent=31 // pred_check_branch
        %289 = sbr.rel (%p287) target = $region36
      $region35: #{_lambda_.1} parent=31 // pred_region
        %290 = vst [vmem:[#allocation2] sm:$0xff] 0.0
        %291 = vst [vmem:[#allocation2 + $0x8] sm:$0xff] 0.0
        %292 = vst [vmem:[#allocation2 + $0x10] sm:$0xff] 0.0
        %293 = vst [vmem:[#allocation2 + $0x18] sm:$0xff] 0.0
        %294 = vst [vmem:[#allocation3] sm:$0xff] 0.0
        %295 = vst [vmem:[#allocation3 + $0x8] sm:$0xff] 0.0
        %296 = vst [vmem:[#allocation3 + $0x10] sm:$0xff] 0.0
        %297 = vst [vmem:[#allocation3 + $0x18] sm:$0xff] 0.0
      $region36: #{_lambda_.1} parent=31 // pred_fallthru
        _
      %v298 = vld [vmem:[%s267] sm:$0xff]
      %v299 = vld [vmem:[%s267 + $0x8] sm:$0xff]
      %v300 = vld [vmem:[%s267 + $0x10] sm:$0xff]
      %v301 = vld [vmem:[%s267 + $0x18] sm:$0xff]
      %v302 = vld [vmem:[%s275] sm:$0xff]
      %v303 = vld [vmem:[%s275 + $0x8] sm:$0xff]
      %v304 = vld [vmem:[%s275 + $0x10] sm:$0xff]
      %v305 = vld [vmem:[%s275 + $0x18] sm:$0xff]
      %v306 = vld [vmem:[%s259] sm:$0xff]
      %v307 = vld [vmem:[%s259 + $0x8] sm:$0xff]
      %v308 = vld [vmem:[%s259 + $0x10] sm:$0xff]
      %v309 = vld [vmem:[%s259 + $0x18] sm:$0xff]
      %v310 = vsub.f32 %v298, %v302
      %v311 = vsub.f32 %v299, %v303
      %v312 = vsub.f32 %v300, %v304
      %v313 = vsub.f32 %v301, %v305
      %v314 = vmul.f32 %v310, %v310
      %v315 = vmul.f32 %v311, %v311
      %v316 = vmul.f32 %v312, %v312
      %v317 = vmul.f32 %v313, %v313
      %v318 = vmul.f32 %v298, %v298
      %v319 = vmul.f32 %v299, %v299
      %v320 = vmul.f32 %v300, %v300
      %v321 = vmul.f32 %v301, %v301
      %322 = vrot.lane.b32.xlu0 %v314, 127
      %v323 = vpop.permute.xlu0 %322
      %324 = vrot.lane.b32.xlu0 %v315, 127
      %v325 = vpop.permute.xlu0 %324
      %326 = vrot.lane.b32.xlu0 %v316, 127
      %v327 = vpop.permute.xlu0 %326
      %328 = vrot.lane.b32.xlu0 %v317, 127
      %v329 = vpop.permute.xlu0 %328
      %v330 = vadd.f32 %v314, %v323
      %v331 = vadd.f32 %v315, %v325
      %v332 = vadd.f32 %v316, %v327
      %v333 = vadd.f32 %v317, %v329
      %334 = vrot.lane.b32.xlu0 %v318, 127
      %v335 = vpop.permute.xlu0 %334
      %336 = vrot.lane.b32.xlu0 %v319, 127
      %v337 = vpop.permute.xlu0 %336
      %338 = vrot.lane.b32.xlu0 %v320, 127
      %v339 = vpop.permute.xlu0 %338
      %340 = vrot.lane.b32.xlu0 %v321, 127
      %v341 = vpop.permute.xlu0 %340
      %v342 = vadd.f32 %v318, %v335
      %v343 = vadd.f32 %v319, %v337
      %v344 = vadd.f32 %v320, %v339
      %v345 = vadd.f32 %v321, %v341
      %v346 = vlaneseq
      %v347 = vand.u32 %v346, 127
      %v348 = vcvt.s32.f32 %v347
      %349 = vrot.lane.b32.xlu0 %v348, 127
      %v350 = vpop.permute.xlu0 %349
      %v351 = vand.u32 %v347, 1
      %vm352 = vcmp.eq.s32.totalorder %v351, 0
      %v353 = vadd.f32 %v348, 1.0
      %v354 = vsub.f32 %v348, 1.0
      %v355 = vsel %vm352, %v353, %v354
      %vm356 = vcmp.eq.f32.partialorder %v350, %v355
      %v357 = vlaneseq
      %v358 = vshrl.u32 %v357, 7
      %v359 = vadd.s32 %v358, 8
      %v360 = vadd.s32 %v358, 16
      %v361 = vadd.s32 %v358, 24
      %s362 = sadd.s32 %s20, %s21
      %s363 = smul.u32 %s362, 32
      %v364 = vstv %s363
      %v365 = vadd.s32 %v358, %v364
      %v366 = vadd.s32 %v359, %v364
      %v367 = vadd.s32 %v360, %v364
      %v368 = vadd.s32 %v361, %v364
      %v369 = vmul.u32 %v365, 128
      %v370 = vmul.u32 %v366, 128
      %v371 = vmul.u32 %v367, 128
      %v372 = vmul.u32 %v368, 128
      %v373 = vadd.s32 %v369, %v347
      %v374 = vadd.s32 %v370, %v347
      %v375 = vadd.s32 %v371, %v347
      %v376 = vadd.s32 %v372, %v347
      %vm377 = vcmp.lt.s32.totalorder %v373, 8192
      %vm378 = vcmp.lt.s32.totalorder %v374, 8192
      %vm379 = vcmp.lt.s32.totalorder %v375, 8192
      %vm380 = vcmp.lt.s32.totalorder %v376, 8192
      %vm381 = vmand %vm356, %vm377
      %vm382 = vmand %vm356, %vm378
      %vm383 = vmand %vm356, %vm379
      %vm384 = vmand %vm356, %vm380
      %v385 = vrsqrt.pop %v342
      %v386 = vmul.f32 %v385, %v342
      %v387 = vmul.f32 %v386, %v385
      %v388 = vmul.f32 0.5, %v387
      %v389 = vsub.f32 1.5, %v388
      %v390 = vmul.f32 %v385, %v389
      %v391 = vmul.f32 %v342, %v390
      %vm392 = vcmp.eq.f32.partialorder %v342, inf
      %v393 = vsel %vm392, %v342, %v391
      %vm394 = vcmp.eq.f32.partialorder %v342, 0.0
      %v395 = vand.u32 %v342, 2147483648
      %v396 = vsel %vm394, %v395, %v393
      %v397 = vrsqrt.pop %v343
      %v398 = vmul.f32 %v397, %v343
      %v399 = vmul.f32 %v398, %v397
      %v400 = vmul.f32 0.5, %v399
      %v401 = vsub.f32 1.5, %v400
      %v402 = vmul.f32 %v397, %v401
      %v403 = vmul.f32 %v343, %v402
      %vm404 = vcmp.eq.f32.partialorder %v343, inf
      %v405 = vsel %vm404, %v343, %v403
      %vm406 = vcmp.eq.f32.partialorder %v343, 0.0
      %v407 = vand.u32 %v343, 2147483648
      %v408 = vsel %vm406, %v407, %v405
      %v409 = vrsqrt.pop %v344
      %v410 = vmul.f32 %v409, %v344
      %v411 = vmul.f32 %v410, %v409
      %v412 = vmul.f32 0.5, %v411
      %v413 = vsub.f32 1.5, %v412
      %v414 = vmul.f32 %v409, %v413
      %v415 = vmul.f32 %v344, %v414
      %vm416 = vcmp.eq.f32.partialorder %v344, inf
      %v417 = vsel %vm416, %v344, %v415
      %vm418 = vcmp.eq.f32.partialorder %v344, 0.0
      %v419 = vand.u32 %v344, 2147483648
      %v420 = vsel %vm418, %v419, %v417
      %v421 = vrsqrt.pop %v345
      %v422 = vmul.f32 %v421, %v345
      %v423 = vmul.f32 %v422, %v421
      %v424 = vmul.f32 0.5, %v423
      %v425 = vsub.f32 1.5, %v424
      %v426 = vmul.f32 %v421, %v425
      %v427 = vmul.f32 %v345, %v426
      %vm428 = vcmp.eq.f32.partialorder %v345, inf
      %v429 = vsel %vm428, %v345, %v427
      %vm430 = vcmp.eq.f32.partialorder %v345, 0.0
      %v431 = vand.u32 %v345, 2147483648
      %v432 = vsel %vm430, %v431, %v429
      %v433 = vadd.f32 %v396, 0.01
      %v434 = vadd.f32 %v408, 0.01
      %v435 = vadd.f32 %v420, 0.01
      %v436 = vadd.f32 %v432, 0.01
      %v437 = vrcp.pop %v433
      %v438 = vmul.f32 %v433, %v437
      %v439 = vsub.f32 1.0, %v438
      %v440 = vmul.f32 %v437, %v439
      %v441 = vadd.f32 %v437, %v440
      %vm442 = vweird.f32 %v433
      %vm443 = vweird.f32 %v437
      %vm444 = vmor %vm442, %vm443
      %v445 = vsel %vm444, %v437, %v441
      %v446 = vand.u32 2147483647, %v433
      %vm447 = vcmp.eq.f32.partialorder %v446, 8.507059e+37
      %v448 = vand.u32 %v433, 2147483648
      %v449 = vor.u32 1.1754944e-38, %v448
      %v450 = vsel %vm447, %v449, %v445
      %v451 = vmul.f32 1.0, %v450
      %v452 = vrcp.pop %v434
      %v453 = vmul.f32 %v434, %v452
      %v454 = vsub.f32 1.0, %v453
      %v455 = vmul.f32 %v452, %v454
      %v456 = vadd.f32 %v452, %v455
      %vm457 = vweird.f32 %v434
      %vm458 = vweird.f32 %v452
      %vm459 = vmor %vm457, %vm458
      %v460 = vsel %vm459, %v452, %v456
      %v461 = vand.u32 2147483647, %v434
      %vm462 = vcmp.eq.f32.partialorder %v461, 8.507059e+37
      %v463 = vand.u32 %v434, 2147483648
      %v464 = vor.u32 1.1754944e-38, %v463
      %v465 = vsel %vm462, %v464, %v460
      %v466 = vmul.f32 1.0, %v465
      %v467 = vrcp.pop %v435
      %v468 = vmul.f32 %v435, %v467
      %v469 = vsub.f32 1.0, %v468
      %v470 = vmul.f32 %v467, %v469
      %v471 = vadd.f32 %v467, %v470
      %vm472 = vweird.f32 %v435
      %vm473 = vweird.f32 %v467
      %vm474 = vmor %vm472, %vm473
      %v475 = vsel %vm474, %v467, %v471
      %v476 = vand.u32 2147483647, %v435
      %vm477 = vcmp.eq.f32.partialorder %v476, 8.507059e+37
      %v478 = vand.u32 %v435, 2147483648
      %v479 = vor.u32 1.1754944e-38, %v478
      %v480 = vsel %vm477, %v479, %v475
      %v481 = vmul.f32 1.0, %v480
      %v482 = vrcp.pop %v436
      %v483 = vmul.f32 %v436, %v482
      %v484 = vsub.f32 1.0, %v483
      %v485 = vmul.f32 %v482, %v484
      %v486 = vadd.f32 %v482, %v485
      %vm487 = vweird.f32 %v436
      %vm488 = vweird.f32 %v482
      %vm489 = vmor %vm487, %vm488
      %v490 = vsel %vm489, %v482, %v486
      %v491 = vand.u32 2147483647, %v436
      %vm492 = vcmp.eq.f32.partialorder %v491, 8.507059e+37
      %v493 = vand.u32 %v436, 2147483648
      %v494 = vor.u32 1.1754944e-38, %v493
      %v495 = vsel %vm492, %v494, %v490
      %v496 = vmul.f32 1.0, %v495
      %v497 = vmul.f32 %v451, %v451
      %v498 = vmul.f32 %v466, %v466
      %v499 = vmul.f32 %v481, %v481
      %v500 = vmul.f32 %v496, %v496
      %v501 = vmul.f32 %v330, %v497
      %v502 = vmul.f32 %v331, %v498
      %v503 = vmul.f32 %v332, %v499
      %v504 = vmul.f32 %v333, %v500
      %v505 = vsel %vm381, %v501, 1.0
      %v506 = vsel %vm382, %v502, 1.0
      %v507 = vsel %vm383, %v503, 1.0
      %v508 = vsel %vm384, %v504, 1.0
      %v509 = vlog2.pop %v505
      %v510 = vmul.f32 %v509, 0.6931472
      %v511 = vlog2.pop %v506
      %v512 = vmul.f32 %v511, 0.6931472
      %v513 = vlog2.pop %v507
      %v514 = vmul.f32 %v513, 0.6931472
      %v515 = vlog2.pop %v508
      %v516 = vmul.f32 %v515, 0.6931472
      %v517 = vmul.f32 %v510, 0.5
      %v518 = vmul.f32 %v512, 0.5
      %v519 = vmul.f32 %v514, 0.5
      %v520 = vmul.f32 %v516, 0.5
      %v521 = vmul.f32 %v517, %v517
      %v522 = vmul.f32 %v518, %v518
      %v523 = vmul.f32 %v519, %v519
      %v524 = vmul.f32 %v520, %v520
      %v525 = vmul.f32 %v342, %v497
      %v526 = vmul.f32 %v343, %v498
      %v527 = vmul.f32 %v344, %v499
      %v528 = vmul.f32 %v345, %v500
      %v529 = vmul.f32 %v306, %v525
      %v530 = vmul.f32 %v307, %v526
      %v531 = vmul.f32 %v308, %v527
      %v532 = vmul.f32 %v309, %v528
      %v533 = vsel %vm381, %v529, 0.0
      %v534 = vsel %vm382, %v530, 0.0
      %v535 = vsel %vm383, %v531, 0.0
      %v536 = vsel %vm384, %v532, 0.0
      %v537 = vld [vmem:[#allocation2] sm:$0xff]
      %v538 = vld [vmem:[#allocation2 + $0x8] sm:$0xff]
      %v539 = vld [vmem:[#allocation2 + $0x10] sm:$0xff]
      %v540 = vld [vmem:[#allocation2 + $0x18] sm:$0xff]
      %v541 = vadd.f32 %v537, %v521
      %v542 = vadd.f32 %v538, %v522
      %v543 = vadd.f32 %v539, %v523
      %v544 = vadd.f32 %v540, %v524
      %545 = vst [vmem:[#allocation2] sm:$0xff] %v541
      %546 = vst [vmem:[#allocation2 + $0x8] sm:$0xff] %v542
      %547 = vst [vmem:[#allocation2 + $0x10] sm:$0xff] %v543
      %548 = vst [vmem:[#allocation2 + $0x18] sm:$0xff] %v544
      %v549 = vld [vmem:[#allocation3] sm:$0xff]
      %v550 = vld [vmem:[#allocation3 + $0x8] sm:$0xff]
      %v551 = vld [vmem:[#allocation3 + $0x10] sm:$0xff]
      %v552 = vld [vmem:[#allocation3 + $0x18] sm:$0xff]
      %v553 = vadd.f32 %v549, %v533
      %v554 = vadd.f32 %v550, %v534
      %v555 = vadd.f32 %v551, %v535
      %v556 = vadd.f32 %v552, %v536
      %557 = vst [vmem:[#allocation3] sm:$0xff] %v553
      %558 = vst [vmem:[#allocation3 + $0x8] sm:$0xff] %v554
      %559 = vst [vmem:[#allocation3 + $0x10] sm:$0xff] %v555
      %560 = vst [vmem:[#allocation3 + $0x18] sm:$0xff] %v556
      // Predicated region
      $region37: #{_lambda_.1} parent=31 // pred_check
        %p561 = pneg %p286
      $region38: #{_lambda_.1} parent=31 // pred_check_branch
        %563 = sbr.rel (%p561) target = $region40
      $region39: #{_lambda_.1} parent=31 // pred_region
        %v564 = vld [vmem:[#allocation2] sm:$0xff]
        %v565 = vld [vmem:[#allocation2 + $0x8] sm:$0xff]
        %v566 = vld [vmem:[#allocation2 + $0x10] sm:$0xff]
        %v567 = vld [vmem:[#allocation2 + $0x18] sm:$0xff]
        %v568 = vadd.f32 %v564, %v566
        %v569 = vadd.f32 %v565, %v567
        %v570 = vadd.f32 %v568, %v569
        %571 = vst [vmem:[%s281] sm:$0xff] %v570
        %v572 = vld [vmem:[#allocation3] sm:$0xff]
        %v573 = vld [vmem:[#allocation3 + $0x8] sm:$0xff]
        %v574 = vld [vmem:[#allocation3 + $0x10] sm:$0xff]
        %v575 = vld [vmem:[#allocation3 + $0x18] sm:$0xff]
        %v576 = vadd.f32 %v572, %v574
        %v577 = vadd.f32 %v573, %v575
        %v578 = vadd.f32 %v576, %v577
        %579 = vst [vmem:[%s285] sm:$0xff] %v578
      $region40: #{_lambda_.1} parent=31 // pred_fallthru
        _
      %p580 = scmp.lt.s32.totalorder %s20, 1
      %s581 = scalar_select %p580, %s20, 1
      %s582 = smul.addr %s581, 8
      %s583 = scalar_lea.vmem %s3, %s582
      %p584 = scmp.lt.s32.totalorder %s20, 1
      %s585 = scalar_select %p584, %s20, 1
      %s586 = smul.addr %s585, 8
      %s587 = scalar_lea.vmem %s4, %s586
      // Predicated region
      $region41: #{_lambda_.1} parent=31 // pred_check
        %p588 = pneg %p130
      $region42: #{_lambda_.1} parent=31 // pred_check_branch
        %590 = sbr.rel (%p588) target = $region44
      $region43: #{_lambda_.1} parent=31 // pred_region
        _
      $region44: #{_lambda_.1} parent=31 // pred_fallthru
        _
      // Predicated region
      $region45: #{_lambda_.1} parent=31 // pred_check
        %p591 = pneg %p156
      $region46: #{_lambda_.1} parent=31 // pred_check_branch
        %593 = sbr.rel (%p591) target = $region48
      $region47: #{_lambda_.1} parent=31 // pred_region
        _
      $region48: #{_lambda_.1} parent=31 // pred_fallthru
        _
    $region32: #{_lambda_.1} parent=5 // pred_fallthru
      _
    %p594 = scmp.le.s32.totalorder 2, %s11
    // Predicated region
    $region49: #{_lambda_.1} parent=5 // pred_check
      %p595 = pneg %p594
    $region50: #{_lambda_.1} parent=5 // pred_check_branch
      %597 = sbr.rel (%p595) target = $region52
    $region51: #{_lambda_.1} parent=5 // pred_region
      %s598 = ssub.s32 %s11, 2
      // Predicated region
      $region53: #{_lambda_.1} parent=51 // pred_check
        %p599 = pneg %p136
      $region54: #{_lambda_.1} parent=51 // pred_check_branch
        %601 = sbr.rel (%p599) target = $region56
      $region55: #{_lambda_.1} parent=51 // pred_region
        %p602 = scmp.lt.s32.totalorder %s22, 1
        %s603 = scalar_select %p602, %s22, 1
        %s604 = smul.addr %s603, 8
        %s605 = scalar_lea.vmem %s3, %s604
      $region56: #{_lambda_.1} parent=51 // pred_fallthru
        _
      // Predicated region
      $region57: #{_lambda_.1} parent=51 // pred_check
        %p606 = pneg %p162
      $region58: #{_lambda_.1} parent=51 // pred_check_branch
        %608 = sbr.rel (%p606) target = $region60
      $region59: #{_lambda_.1} parent=51 // pred_region
        %p609 = scmp.lt.s32.totalorder %s22, 1
        %s610 = scalar_select %p609, %s22, 1
        %s611 = smul.addr %s610, 8
        %s612 = scalar_lea.vmem %s4, %s611
      $region60: #{_lambda_.1} parent=51 // pred_fallthru
        _
    $region52: #{_lambda_.1} parent=5 // pred_fallthru
      _
  $region6: #{_lambda_.1} parent=0 // loop_footer
    %s15 = sadd.s32 1, %s11
  $region7: #{_lambda_.1} parent=0 // loop_footer_branch
    %10 = sbr.rel target = $region3
  $region8: #{_lambda_.1} parent=0 // loop_exit
    _

</llo_original>
